<compile_context>
chip_gen: v6e
topology: v6e:2x2x1
jax: 0.10.0
libtpu: 0.0.40
codegen_flags: <defaults>
</compile_context>

<pallas_src>
import functools

import jax
import jax.numpy as jnp
from jax import lax
from jax.experimental import pallas as pl
from jax.experimental.pallas import tpu as pltpu

_EPS = 1e-5
_LANES = 128
_TILE_ROWS = 1024  # rows of 128 lanes per grid step (f32: 512 KiB per block)


def _logmse_kernel(label_ref, pred_ref, out_ref, acc_ref, *,
                   total_elems, valid_rows, tile_rows):
    i = pl.program_id(0)

    @pl.when(i == 0)
    def _():
        acc_ref[...] = jnp.zeros_like(acc_ref)

    lbl = label_ref[...].astype(jnp.float32)
    prd = pred_ref[...].astype(jnp.float32)
    # Fused: one log instead of two (EUP has a single slot per bundle).
    d = jnp.log((lbl + _EPS) / (prd + _EPS))
    sq = d * d

    # Mask rows past the true row extent (tail tile over-cover from cdiv grid).
    # jnp.where is a select, so garbage/NaN in the padded region never leaks.
    row = lax.broadcasted_iota(jnp.int32, sq.shape, 0) + i * tile_rows
    acc_ref[...] += jnp.where(row < valid_rows, sq, 0.0)

    @pl.when(i == pl.num_programs(0) - 1)
    def _():
        out_ref[0, 0] = jnp.sum(acc_ref[...]) / jnp.float32(total_elems)


def log_mse_loss(label, prediction, *, tile_rows=_TILE_ROWS):
    """Scalar LogMSE loss between two same-shaped arrays."""
    assert label.shape == prediction.shape, "label/prediction shape mismatch"
    total_elems = int(label.size)

    # Flatten to a lane-dense (rows, 128) slab in the ORIGINAL dtype (no
    # upcast in the wrapper -> narrow DMA for bf16/fp8 callers).
    flat_l = label.reshape(-1)
    flat_p = prediction.reshape(-1)
    lane_pad = (-total_elems) % _LANES
    if lane_pad:
        # TODO(synk): lane-remainder fallback still copies both inputs once;
        # it never triggers for typical NCHW sizes (H*W multiple of 128 lanes
        # overall).  Padding with 1.0 contributes exactly 0 to the sum.
        flat_l = jnp.concatenate([flat_l, jnp.ones((lane_pad,), flat_l.dtype)])
        flat_p = jnp.concatenate([flat_p, jnp.ones((lane_pad,), flat_p.dtype)])
    rows = flat_l.shape[0] // _LANES
    l2d = flat_l.reshape(rows, _LANES)
    p2d = flat_p.reshape(rows, _LANES)

    # Clamp the tile to the (sublane-rounded) array extent for small inputs.
    tile = max(8, min(int(tile_rows), ((rows + 7) // 8) * 8))
    grid = (pl.cdiv(rows, tile),)

    kernel = functools.partial(
        _logmse_kernel,
        total_elems=total_elems,
        valid_rows=rows,
        tile_rows=tile,
    )

    out = pl.pallas_call(
        kernel,
        out_shape=jax.ShapeDtypeStruct((1, 1), jnp.float32),
        grid_spec=pltpu.PrefetchScalarGridSpec(
            num_scalar_prefetch=0,
            grid=grid,
            in_specs=[
                pl.BlockSpec((tile, _LANES), lambda i: (i, 0)),
                pl.BlockSpec((tile, _LANES), lambda i: (i, 0)),
            ],
            out_specs=pl.BlockSpec(
                (1, 1), lambda i: (0, 0), memory_space=pltpu.SMEM
            ),
            scratch_shapes=[pltpu.VMEM((tile, _LANES), jnp.float32)],
        ),
        compiler_params=pltpu.CompilerParams(
            dimension_semantics=("arbitrary",),
        ),
    )(l2d, p2d)
    return out[0, 0]


if __name__ == "__main__":
    key = jax.random.PRNGKey(0)
    k1, k2 = jax.random.split(key)
    # Small NCHW-like shapes: batch=2, channels=4, spatial=16x16.
    # Positive values (log of negative would be NaN, matching PyTorch).
    label = jax.random.uniform(k1, (2, 4, 16, 16), jnp.float32, 0.1, 2.0)
    prediction = jax.random.uniform(k2, (2, 4, 16, 16), jnp.float32, 0.1, 2.0)

    loss = log_mse_loss(label, prediction)
    loss = jax.block_until_ready(loss)

    # Pure-JAX reference check.
    ref = jnp.mean(
        (jnp.log(label + _EPS) - jnp.log(prediction + _EPS)) ** 2
    )
    assert jnp.allclose(loss, ref, rtol=1e-5, atol=1e-6), (loss, ref)
    print("KERNEL_OK")
</pallas_src>

<mosaic_0001>
module attributes {stable_mosaic.version = 11 : i64} {
  func.func @_logmse_kernel(%arg0: i32, %arg1: memref<16x128xf32, #tpu.memory_space<vmem>>, %arg2: memref<16x128xf32, #tpu.memory_space<vmem>>, %arg3: memref<1x1xf32, #tpu.memory_space<smem>>, %arg4: memref<16x128xf32, #tpu.memory_space<vmem>>) attributes {dimension_semantics = [#tpu.dimension_semantics<arbitrary>], iteration_bounds = array<i64: 1>, scalar_prefetch = 0 : i64, scratch_operands = 1 : i64, tpu.core_type = #tpu.core_type<tc>, window_params = [{transform_indices = @transform_0, window_bounds = array<i64: 16, 128>}, {transform_indices = @transform_1, window_bounds = array<i64: 16, 128>}, {transform_indices = @transform_2, window_bounds = array<i64: 1, 1>}]} {
    %c0_i32 = arith.constant 0 : i32
    %0 = arith.cmpi eq, %arg0, %c0_i32 : i32
    %1 = arith.extui %0 : i1 to i32
    %c0_i32_0 = arith.constant 0 : i32
    %2 = arith.cmpi ne, %1, %c0_i32_0 : i32
    scf.if %2 {
      %cst_13 = arith.constant 0.000000e+00 : f32
      %26 = vector.broadcast %cst_13 : f32 to vector<16x128xf32>
      %c0_14 = arith.constant 0 : index
      %c0_15 = arith.constant 0 : index
      %27 = vector.load %arg4[%c0_14, %c0_15] : memref<16x128xf32, #tpu.memory_space<vmem>>, vector<16x128xf32>
      tpu.vector_store %arg4[%c0_14, %c0_15], %26 {strides = array<i32>} : memref<16x128xf32, #tpu.memory_space<vmem>>, vector<16x128xf32>,
    } else {
    }
    %c0 = arith.constant 0 : index
    %c0_1 = arith.constant 0 : index
    %3 = vector.load %arg1[%c0, %c0_1] : memref<16x128xf32, #tpu.memory_space<vmem>>, vector<16x128xf32>
    %c0_2 = arith.constant 0 : index
    %c0_3 = arith.constant 0 : index
    %4 = vector.load %arg2[%c0_2, %c0_3] : memref<16x128xf32, #tpu.memory_space<vmem>>, vector<16x128xf32>
    %cst = arith.constant 9.99999974E-6 : f32
    %5 = vector.broadcast %cst : f32 to vector<16x128xf32>
    %6 = arith.addf %3, %5 : vector<16x128xf32>
    %cst_4 = arith.constant 9.99999974E-6 : f32
    %7 = vector.broadcast %cst_4 : f32 to vector<16x128xf32>
    %8 = arith.addf %4, %7 : vector<16x128xf32>
    %9 = arith.divf %6, %8 : vector<16x128xf32>
    %10 = math.log %9 : vector<16x128xf32>
    %11 = arith.mulf %10, %10 : vector<16x128xf32>
    %12 = tpu.iota {dimensions = array<i32: 0>} : vector<16x128xi32>
    %c16_i32 = arith.constant 16 : i32
    %13 = arith.muli %arg0, %c16_i32 : i32
    %14 = vector.broadcast %13 : i32 to vector<16x128xi32>
    %15 = arith.addi %12, %14 : vector<16x128xi32>
    %c0_5 = arith.constant 0 : index
    %c0_6 = arith.constant 0 : index
    %16 = vector.load %arg4[%c0_5, %c0_6] : memref<16x128xf32, #tpu.memory_space<vmem>>, vector<16x128xf32>
    %c16_i32_7 = arith.constant 16 : i32
    %17 = vector.broadcast %c16_i32_7 : i32 to vector<16x128xi32>
    %18 = arith.cmpi slt, %15, %17 : vector<16x128xi32>
    %cst_8 = arith.constant 0.000000e+00 : f32
    %19 = vector.broadcast %cst_8 : f32 to vector<16x128xf32>
    %20 = arith.select %18, %11, %19 : vector<16x128xi1>, vector<16x128xf32>
    %21 = arith.addf %16, %20 : vector<16x128xf32>
    %c0_9 = arith.constant 0 : index
    %c0_10 = arith.constant 0 : index
    %22 = vector.load %arg4[%c0_9, %c0_10] : memref<16x128xf32, #tpu.memory_space<vmem>>, vector<16x128xf32>
    tpu.vector_store %arg4[%c0_9, %c0_10], %21 {strides = array<i32>} : memref<16x128xf32, #tpu.memory_space<vmem>>, vector<16x128xf32>,
    %c0_i32_11 = arith.constant 0 : i32
    %23 = arith.cmpi eq, %arg0, %c0_i32_11 : i32
    %24 = arith.extui %23 : i1 to i32
    %c0_i32_12 = arith.constant 0 : i32
    %25 = arith.cmpi ne, %24, %c0_i32_12 : i32
    scf.if %25 {
      %c0_13 = arith.constant 0 : index
      %c0_14 = arith.constant 0 : index
      %26 = vector.load %arg4[%c0_13, %c0_14] : memref<16x128xf32, #tpu.memory_space<vmem>>, vector<16x128xf32>
      %27 = vector.shape_cast %26 : vector<16x128xf32> to vector<1x16x128xf32>
      %cst_15 = arith.constant dense<0.000000e+00> : vector<1xf32>
      %28 = vector.multi_reduction <add>, %27, %cst_15 [1, 2] : vector<1x16x128xf32> to vector<1xf32>
      %29 = vector.shape_cast %28 : vector<1xf32> to vector<1x1x1xf32>
      %30 = vector.extract %29[0, 0, 0] : f32 from vector<1x1x1xf32>
      %cst_16 = arith.constant 2.048000e+03 : f32
      %31 = arith.divf %30, %cst_16 : f32
      %c0_17 = arith.constant 0 : index
      %c0_18 = arith.constant 0 : index
      %32 = memref.load %arg3[%c0_17, %c0_18] : memref<1x1xf32, #tpu.memory_space<smem>>
      memref.store %31, %arg3[%c0_17, %c0_18] : memref<1x1xf32, #tpu.memory_space<smem>>
    } else {
    }
    return
  }
  func.func @transform_0(%arg0: i32) -> (i32, i32) {
    %c0_i32 = arith.constant 0 : i32
    %c0_i32_0 = arith.constant 0 : i32
    return %arg0, %c0_i32 : i32, i32
  }
  func.func @transform_1(%arg0: i32) -> (i32, i32) {
    %c0_i32 = arith.constant 0 : i32
    %c0_i32_0 = arith.constant 0 : i32
    return %arg0, %c0_i32 : i32, i32
  }
  func.func @transform_2(%arg0: i32) -> (i32, i32) {
    %c0_i32 = arith.constant 0 : i32
    %c0_i32_0 = arith.constant 0 : i32
    %c0_i32_1 = arith.constant 0 : i32
    return %c0_i32, %c0_i32_0 : i32, i32
  }
}

</mosaic_0001>

<llo_original>
// kernel: tpu_custom_call.1
$region0: #{tpu_custom_call.1}
  #allocation0 [shape = 'u32[]', space=smem, size = 0x4, offset = 0x4, fixed_abs, tag = 'smem constant byte address 0x4 - core index']
  #allocation1 [shape = 'u32[144,128]{1,0:T(1,128)}', space=vmem, size = 0x12000, scoped, tag = 'internal scratch']
  #allocation2 [shape = 'f32[16,128]{1,0:T(8,128)}', space=vmem, size = 0x2000, scoped, tag = 'scratch operand']
  %s0 = inlined_call_operand.hbm [shape: f32[16,128], index: 0, kind: input, shape index: {}]
  %s1 = inlined_call_operand.hbm [shape: f32[16,128], index: 1, kind: input, shape index: {}]
  %s2 = inlined_call_operand.hbm [shape: f32[1,1], index: 2, kind: output, shape index: {}]
  %s3 = sld [smem:[#allocation0]]
  $region34: #{tpu_custom_call.1} parent=0
    _
  %s5 = ssub.s32 1, %s3
  %s6 = scalar_select 0, %s5, %s3
  $region1: #{tpu_custom_call.1} parent=0
    #allocation3 [shape = 'u8[8192]{0}', space=vmem, size = 0x2000, scoped, tag = 'input window, operand 0, single buffered']
    #allocation4 [shape = 's32[1]{0}', space=sflag, size = 0x4, scoped, tag = 'scoped memory for tpu_custom_call.1']
    #allocation5 [shape = 's32[1]{0}', space=sflag, size = 0x4, scoped, tag = 'scoped memory for tpu_custom_call.1']
    #allocation6 [shape = 'u8[8192]{0}', space=vmem, size = 0x2000, scoped, tag = 'input window, operand 1, single buffered']
    #allocation7 [shape = 's32[1]{0}', space=sflag, size = 0x4, scoped, tag = 'scoped memory for tpu_custom_call.1']
    #allocation8 [shape = 'u8[512]{0}', space=smem, size = 0x200, scoped, tag = 'output window, operand 0, single buffered']
    %7 = vsyncpa [#allocation4], 0
    %8 = vsyncpa [#allocation7], 0
    %9 = vsyncpa [#allocation5], 0
    // Predicated region
    $region2: #{tpu_custom_call.1} parent=1 // pred_check
      _
    $region3: #{tpu_custom_call.1} parent=1 // pred_check_branch
      %11 = sbr.rel (0) target = $region5
    $region4: #{tpu_custom_call.1} parent=1 // pred_region
      %s13 = ssub.s32 256, 256
      %14 = vsyncadd [#allocation4], %s13
      %s15 = sshll.u32 [#allocation3], 4
      %s16 = int_to_ptr.vmem [resolvable:$true] %s15
      %21 = dma.hbm_to_vmem [thread:$0]  %s0, 256, %s16, [#allocation4], 128, 128, 8
    $region5: #{tpu_custom_call.1} parent=1 // pred_fallthru
      _
    // Predicated region
    $region6: #{tpu_custom_call.1} parent=1 // pred_check
      _
    $region7: #{tpu_custom_call.1} parent=1 // pred_check_branch
      %23 = sbr.rel (0) target = $region9
    $region8: #{tpu_custom_call.1} parent=1 // pred_region
      %s25 = ssub.s32 256, 256
      %26 = vsyncadd [#allocation7], %s25
      %s27 = sshll.u32 [#allocation6], 4
      %s28 = int_to_ptr.vmem [resolvable:$true] %s27
      %33 = dma.hbm_to_vmem [thread:$0]  %s1, 256, %s28, [#allocation7], 128, 128, 8
    $region9: #{tpu_custom_call.1} parent=1 // pred_fallthru
      _
    // Predicated region
    $region10: #{tpu_custom_call.1} parent=1 // pred_check
      _
    $region11: #{tpu_custom_call.1} parent=1 // pred_check_branch
      %35 = sbr.rel (0) target = $region13
    $region12: #{tpu_custom_call.1} parent=1 // pred_region
      %36 = dma.done [#allocation4], 256
    $region13: #{tpu_custom_call.1} parent=1 // pred_fallthru
      _
    // Predicated region
    $region14: #{tpu_custom_call.1} parent=1 // pred_check
      _
    $region15: #{tpu_custom_call.1} parent=1 // pred_check_branch
      %38 = sbr.rel (0) target = $region17
    $region16: #{tpu_custom_call.1} parent=1 // pred_region
      %39 = dma.done [#allocation7], 256
    $region17: #{tpu_custom_call.1} parent=1 // pred_fallthru
      _
    %p40 = scmp.eq.s32.totalorder 0, 0
    // Predicated region
    $region18: #{tpu_custom_call.1} parent=1 // pred_check
      %p41 = pneg %p40
    $region19: #{tpu_custom_call.1} parent=1 // pred_check_branch
      %43 = sbr.rel (%p41) target = $region21
    $region20: #{tpu_custom_call.1} parent=1 // pred_region
      %44 = vst [vmem:[#allocation2] sm:$0xff] 0.0
      %45 = vst [vmem:[#allocation2 + $0x8] sm:$0xff] 0.0
    $region21: #{tpu_custom_call.1} parent=1 // pred_fallthru
      _
    %v46 = vld [vmem:[#allocation3] sm:$0xff]
    %v47 = vld [vmem:[#allocation3 + $0x8] sm:$0xff]
    %v48 = vld [vmem:[#allocation6] sm:$0xff]
    %v49 = vld [vmem:[#allocation6 + $0x8] sm:$0xff]
    %v50 = vadd.f32 %v46, 1e-05
    %v51 = vadd.f32 %v47, 1e-05
    %v52 = vadd.f32 %v48, 1e-05
    %v53 = vadd.f32 %v49, 1e-05
    %v54 = vrcp.pop %v52
    %v55 = vmul.f32 %v50, %v54
    %v56 = vrcp.pop %v53
    %v57 = vmul.f32 %v51, %v56
    %v58 = vlog2.pop %v55
    %v59 = vmul.f32 %v58, 0.6931472
    %v60 = vlog2.pop %v57
    %v61 = vmul.f32 %v60, 0.6931472
    %v62 = vmul.f32 %v59, %v59
    %v63 = vmul.f32 %v61, %v61
    %v64 = vlaneseq
    %v65 = vshrl.u32 %v64, 7
    %v66 = vadd.s32 %v65, 8
    %s67 = smul.u32 0, 16
    %v68 = vstv %s67
    %v69 = vadd.s32 %v65, %v68
    %v70 = vadd.s32 %v66, %v68
    %v71 = vld [vmem:[#allocation2] sm:$0xff]
    %v72 = vld [vmem:[#allocation2 + $0x8] sm:$0xff]
    %vm73 = vcmp.lt.s32.totalorder %v69, 16
    %vm74 = vcmp.lt.s32.totalorder %v70, 16
    %v75 = vsel %vm73, %v62, 0.0
    %v76 = vsel %vm74, %v63, 0.0
    %v77 = vadd.f32 %v71, %v75
    %v78 = vadd.f32 %v72, %v76
    %79 = vst [vmem:[#allocation2] sm:$0xff] %v77
    %80 = vst [vmem:[#allocation2 + $0x8] sm:$0xff] %v78
    // Predicated region
    $region22: #{tpu_custom_call.1} parent=1 // pred_check
      %p81 = pneg %p40
    $region23: #{tpu_custom_call.1} parent=1 // pred_check_branch
      %83 = sbr.rel (%p81) target = $region25
    $region24: #{tpu_custom_call.1} parent=1 // pred_region
      %v84 = vld [vmem:[#allocation2] sm:$0xff]
      %v85 = vld [vmem:[#allocation2 + $0x8] sm:$0xff]
      %v86 = vadd.f32 %v84, %v85
      %87 = vadd.xlane.f32.xlu0 %v86
      %v88 = vpop.xlane.xlu0 %87
      %v89 = vrot.slane %v88, 4
      %v90 = vadd.f32 %v88, %v89
      %v91 = vrot.slane %v90, 2
      %v92 = vadd.f32 %v90, %v91
      %v93 = vrot.slane %v92, 1
      %v94 = vadd.f32 %v92, %v93
      %s95 = vtos %v94
      %v96 = vrcp.pop 2048.0
      %s97 = vtos %v96
      %s98 = smul.f32 %s95, %s97
      %s99 = scalar_lea.smem [#allocation8], 0
      %100 = sst [smem:[%s99]] %s98
    $region25: #{tpu_custom_call.1} parent=1 // pred_fallthru
      _
    // Predicated region
    $region26: #{tpu_custom_call.1} parent=1 // pred_check
      _
    $region27: #{tpu_custom_call.1} parent=1 // pred_check_branch
      %102 = sbr.rel (0) target = $region29
    $region28: #{tpu_custom_call.1} parent=1 // pred_region
      %s104 = ssub.s32 16, 16
      %105 = vsyncadd [#allocation5], %s104
      %108 = dma.smem_to_hbm [#allocation8], 16, %s2, [#allocation5]
    $region29: #{tpu_custom_call.1} parent=1 // pred_fallthru
      _
    // Predicated region
    $region30: #{tpu_custom_call.1} parent=1 // pred_check
      _
    $region31: #{tpu_custom_call.1} parent=1 // pred_check_branch
      %110 = sbr.rel (0) target = $region33
    $region32: #{tpu_custom_call.1} parent=1 // pred_region
      %111 = dma.done [#allocation5], 16
    $region33: #{tpu_custom_call.1} parent=1 // pred_fallthru
      _
    %112 = sfence
    %113 = vsyncpa [#allocation4], 1
    %114 = vsyncpa [#allocation7], 1
    %115 = vsyncpa [#allocation5], 1

</llo_original>
